<compile_context>
chip_gen: v7x
topology: tpu7x:2x2x1
jax: 0.10.0
libtpu: 0.0.40
codegen_flags: <defaults>
</compile_context>

<pallas_src>
import jax
import jax.numpy as jnp
from jax.experimental import pallas as pl
from jax.experimental.pallas import tpu as pltpu

MARGIN = 0.002
EPS = 1e-6  # F.pairwise_distance default eps


# ----------------------------------------------------------------------------
# Hardware-aware configuration
# ----------------------------------------------------------------------------
def _hw_config():
    """Generation-aware VMEM budgets / core count.

    v5e/v6e: 128 MiB VMEM, 1 TensorCore -> big tiles, no megacore balancing.
    v7x    :  64 MiB VMEM per TC, 2 TensorCores -> tight budget, even tile count.
    Falls back to the conservative (v7x-like) config if the query fails.
    """
    vmem_bytes = 64 * 1024 * 1024
    try:
        info = pltpu.get_tpu_info()
        vmem_bytes = int(getattr(info, "vmem_capacity_bytes", vmem_bytes))
    except Exception:
        pass
    if vmem_bytes >= 100 * 1024 * 1024:
        # Large-VMEM, single-TensorCore generations (v5e / v6e).
        return {"input_budget": 72 * 1024 * 1024,
                "vmem_limit": 96 * 1024 * 1024,
                "num_cores": 1}
    # Small-VMEM, dual-TensorCore generation (v7x-like).
    return {"input_budget": 32 * 1024 * 1024,
            "vmem_limit": 48 * 1024 * 1024,
            "num_cores": 2}


def _pick_tn(N, num_cores):
    """Largest multiple-of-8 divisor of N (<= 1024); on dual-core chips prefer a
    tn that yields an EVEN number of row tiles so the parallel axis splits 1:1
    across TensorCores."""
    target = min(N, 1024)
    best_any = None
    best_even = None
    t = (target // 8) * 8
    while t >= 8:
        if N % t == 0:
            if best_any is None:
                best_any = t
            if num_cores > 1 and (N // t) % 2 == 0:
                best_even = t
                break
            if num_cores == 1:
                break
        t -= 8
    if num_cores > 1 and best_even is not None:
        return best_even
    if best_any is not None:
        return best_any
    return N  # no multiple-of-8 divisor; full-batch block is always legal


def _pick_td(N, D, tn, itemsize, input_budget):
    """Feature-chunk width: full D if it fits the double-buffered input budget,
    else the largest multiple-of-128 divisor of D that does."""
    max_td = max(128, input_budget // (2 * 2 * itemsize * tn))
    if D <= max_td:
        return D
    t = (min(D, max_td) // 128) * 128
    while t >= 128:
        if D % t == 0:
            return t
        t -= 128
    # TODO(synk): pathological D with no 128-multiple divisor; single full-D
    # chunk relies on vmem_limit (could zero-pad + mask +EPS on padded lanes).
    return D


# ----------------------------------------------------------------------------
# Kernels
# ----------------------------------------------------------------------------
def _myloss_kernel_single(o1_ref, o2_ref, y_ref, out_ref):
    """Fast path: whole feature dim in one tile. Grid = (N//tn,)."""
    diff = o1_ref[...].astype(jnp.float32) - o2_ref[...].astype(jnp.float32) + EPS
    sq = jnp.sum(diff * diff, axis=-1, keepdims=True)   # (tn, 1) == dist^2
    dist = jnp.sqrt(sq)
    hinge = jnp.maximum(0.0, MARGIN - dist)
    y = y_ref[...]                                       # (tn, 1)
    out_ref[...] = y * (hinge * hinge) + (1.0 - y) * sq


def _myloss_kernel_chunked(o1_ref, o2_ref, y_ref, out_ref, acc_ref):
    """Chunked path: grid = (N//tn, D//td), td % 128 == 0.
    acc_ref is a lane-dense (tn, 128) partial-sum accumulator; the cross-lane
    reduce + sqrt/hinge + lane-sparse store are deferred to the last k step."""
    k = pl.program_id(1)

    @pl.when(k == 0)
    def _init():
        acc_ref[...] = jnp.zeros_like(acc_ref)

    diff = o1_ref[...].astype(jnp.float32) - o2_ref[...].astype(jnp.float32) + EPS
    d2 = diff * diff                                     # (tn, td)
    width = d2.shape[-1]
    folded = d2[:, 0:128]
    for j in range(1, width // 128):                     # static, VPU-only adds
        folded = folded + d2[:, j * 128:(j + 1) * 128]
    acc_ref[...] += folded                               # (tn, 128)

    @pl.when(k == pl.num_programs(1) - 1)
    def _finalize():
        sq = jnp.sum(acc_ref[...], axis=-1, keepdims=True)   # single XLU reduce
        dist = jnp.sqrt(sq)
        hinge = jnp.maximum(0.0, MARGIN - dist)
        y = y_ref[...]
        out_ref[...] = y * (hinge * hinge) + (1.0 - y) * sq


# ----------------------------------------------------------------------------
# Wrapper
# ----------------------------------------------------------------------------
def my_loss(output1, output2, y_test, *, tn=None, td=None):
    """output1, output2: (N, D) float32/bfloat16; y_test: (N,) -> (N,) float32."""
    output1 = jnp.asarray(output1)
    output2 = jnp.asarray(output2)
    if (output1.dtype != output2.dtype
            or output1.dtype not in (jnp.float32, jnp.bfloat16)):
        output1 = output1.astype(jnp.float32)
        output2 = output2.astype(jnp.float32)
    assert output1.ndim == 2 and output1.shape == output2.shape
    N, D = output1.shape
    y2d = jnp.asarray(y_test, jnp.float32).reshape(N, 1)

    cfg = _hw_config()
    itemsize = jnp.dtype(output1.dtype).itemsize

    if tn is None:
        tn = _pick_tn(N, cfg["num_cores"])
    if td is None:
        td = _pick_td(N, D, tn, itemsize, cfg["input_budget"])
    assert tn == N or (tn % 8 == 0 and N % tn == 0), (
        f"tn={tn} must equal N or be a multiple of 8 dividing N={N}")
    assert td == D or (td % 128 == 0 and D % td == 0), (
        f"td={td} must equal D or be a multiple of 128 dividing D={D}")

    cost = pl.CostEstimate(
        flops=3 * N * D,
        transcendentals=N,
        bytes_accessed=2 * N * D * itemsize + 8 * N,
    )
    out_shape = jax.ShapeDtypeStruct((N, 1), jnp.float32)

    if td == D:
        # -------- single-chunk fast path: no accumulator, no pl.when --------
        out = pl.pallas_call(
            _myloss_kernel_single,
            out_shape=out_shape,
            grid_spec=pltpu.PrefetchScalarGridSpec(
                num_scalar_prefetch=0,
                grid=(N // tn,),
                in_specs=[
                    pl.BlockSpec((tn, D), lambda i: (i, 0)),
                    pl.BlockSpec((tn, D), lambda i: (i, 0)),
                    pl.BlockSpec((tn, 1), lambda i: (i, 0)),
                ],
                out_specs=pl.BlockSpec((tn, 1), lambda i: (i, 0)),
            ),
            compiler_params=pltpu.CompilerParams(
                dimension_semantics=("parallel",),
                vmem_limit_bytes=cfg["vmem_limit"],
            ),
            cost_estimate=cost,
        )(output1, output2, y2d)
    else:
        # -------- chunked feature-reduction path --------
        out = pl.pallas_call(
            _myloss_kernel_chunked,
            out_shape=out_shape,
            grid_spec=pltpu.PrefetchScalarGridSpec(
                num_scalar_prefetch=0,
                grid=(N // tn, D // td),
                in_specs=[
                    pl.BlockSpec((tn, td), lambda i, k: (i, k)),
                    pl.BlockSpec((tn, td), lambda i, k: (i, k)),
                    pl.BlockSpec((tn, 1), lambda i, k: (i, 0)),
                ],
                out_specs=pl.BlockSpec((tn, 1), lambda i, k: (i, 0)),
                scratch_shapes=[pltpu.VMEM((tn, 128), jnp.float32)],
            ),
            compiler_params=pltpu.CompilerParams(
                dimension_semantics=("parallel", "arbitrary"),
                vmem_limit_bytes=cfg["vmem_limit"],
            ),
            cost_estimate=cost,
        )(output1, output2, y2d)
    return out[:, 0]


# ----------------------------------------------------------------------------
# Reference + self-test
# ----------------------------------------------------------------------------
def _reference(output1, output2, y_test):
    o1 = jnp.asarray(output1, jnp.float32)
    o2 = jnp.asarray(output2, jnp.float32)
    diff = o1 - o2 + EPS
    dist = jnp.sqrt(jnp.sum(diff * diff, axis=-1))
    return y_test * jnp.maximum(0.0, MARGIN - dist) ** 2 + (1.0 - y_test) * dist ** 2


if __name__ == "__main__":
    key = jax.random.PRNGKey(0)
    k1, k2, k3 = jax.random.split(key, 3)

    # 1) Small shapes consistent with the module (batch of embedding pairs);
    #    exercises the single-chunk fast path.
    N, D = 8, 32
    output1 = jax.random.normal(k1, (N, D), dtype=jnp.float32)
    output2 = jax.random.normal(k2, (N, D), dtype=jnp.float32)
    y_test = jax.random.bernoulli(k3, 0.5, (N,)).astype(jnp.float32)

    loss = jax.block_until_ready(my_loss(output1, output2, y_test))
    ref = _reference(output1, output2, y_test)
    assert loss.shape == (N,)
    assert jnp.allclose(loss, ref, atol=1e-5, rtol=1e-5), (loss, ref)

    # 2) Multi-step grid (row tiles x 2 feature chunks of 256 lanes) validating
    #    the lane-dense accumulator + pl.when init/finalize path.
    N2, D2 = 32, 512
    o1b = jax.random.normal(k1, (N2, D2), dtype=jnp.float32)
    o2b = jax.random.normal(k2, (N2, D2), dtype=jnp.float32)
    yb = jax.random.bernoulli(k3, 0.5, (N2,)).astype(jnp.float32)
    loss2 = jax.block_until_ready(my_loss(o1b, o2b, yb, td=256))
    ref2 = _reference(o1b, o2b, yb)
    assert jnp.allclose(loss2, ref2, atol=1e-4, rtol=1e-5), (loss2, ref2)

    # 3) bfloat16 inputs (halved HBM traffic), upcast to f32 inside the kernel.
    N3, D3 = 16, 128
    o1c = jax.random.normal(k1, (N3, D3), dtype=jnp.bfloat16)
    o2c = jax.random.normal(k2, (N3, D3), dtype=jnp.bfloat16)
    yc = jax.random.bernoulli(k3, 0.5, (N3,)).astype(jnp.float32)
    loss3 = jax.block_until_ready(my_loss(o1c, o2c, yc))
    ref3 = _reference(o1c, o2c, yc)
    assert jnp.allclose(loss3, ref3, atol=1e-5, rtol=1e-5), (loss3, ref3)

    print("KERNEL_OK")
</pallas_src>

<mosaic_0001>
module attributes {stable_mosaic.version = 11 : i64} {
  func.func @_myloss_kernel_single(%arg0: i32, %arg1: memref<8x32xf32, #tpu.memory_space<vmem>>, %arg2: memref<8x32xf32, #tpu.memory_space<vmem>>, %arg3: memref<8x1xf32, #tpu.memory_space<vmem>>, %arg4: memref<8x1xf32, #tpu.memory_space<vmem>>) attributes {dimension_semantics = [#tpu.dimension_semantics<parallel>], iteration_bounds = array<i64: 1>, scalar_prefetch = 0 : i64, scratch_operands = 0 : i64, tpu.core_type = #tpu.core_type<tc>, window_params = [{transform_indices = @transform_0, window_bounds = array<i64: 8, 32>}, {transform_indices = @transform_1, window_bounds = array<i64: 8, 32>}, {transform_indices = @transform_2, window_bounds = array<i64: 8, 1>}, {transform_indices = @transform_3, window_bounds = array<i64: 8, 1>}]} {
    %c0 = arith.constant 0 : index
    %c0_0 = arith.constant 0 : index
    %0 = vector.load %arg1[%c0, %c0_0] : memref<8x32xf32, #tpu.memory_space<vmem>>, vector<8x32xf32>
    %c0_1 = arith.constant 0 : index
    %c0_2 = arith.constant 0 : index
    %1 = vector.load %arg2[%c0_1, %c0_2] : memref<8x32xf32, #tpu.memory_space<vmem>>, vector<8x32xf32>
    %2 = arith.subf %0, %1 : vector<8x32xf32>
    %cst = arith.constant 9.99999997E-7 : f32
    %3 = vector.broadcast %cst : f32 to vector<8x32xf32>
    %4 = arith.addf %2, %3 : vector<8x32xf32>
    %5 = arith.mulf %4, %4 : vector<8x32xf32>
    %cst_3 = arith.constant dense<0.000000e+00> : vector<8xf32>
    %6 = vector.multi_reduction <add>, %5, %cst_3 [1] : vector<8x32xf32> to vector<8xf32>
    %7 = vector.shape_cast %6 : vector<8xf32> to vector<8x1xf32>
    %8 = math.sqrt %7 : vector<8x1xf32>
    %cst_4 = arith.constant 2.000000e-03 : f32
    %9 = vector.broadcast %cst_4 : f32 to vector<8x1xf32>
    %10 = arith.subf %9, %8 : vector<8x1xf32>
    %cst_5 = arith.constant 0.000000e+00 : f32
    %11 = vector.broadcast %cst_5 : f32 to vector<8x1xf32>
    %12 = arith.maximumf %11, %10 : vector<8x1xf32>
    %c0_6 = arith.constant 0 : index
    %c0_7 = arith.constant 0 : index
    %13 = vector.load %arg3[%c0_6, %c0_7] : memref<8x1xf32, #tpu.memory_space<vmem>>, vector<8x1xf32>
    %14 = arith.mulf %12, %12 : vector<8x1xf32>
    %15 = arith.mulf %13, %14 : vector<8x1xf32>
    %cst_8 = arith.constant 1.000000e+00 : f32
    %16 = vector.broadcast %cst_8 : f32 to vector<8x1xf32>
    %17 = arith.subf %16, %13 : vector<8x1xf32>
    %18 = arith.mulf %17, %7 : vector<8x1xf32>
    %19 = arith.addf %15, %18 : vector<8x1xf32>
    %c0_9 = arith.constant 0 : index
    %c0_10 = arith.constant 0 : index
    %20 = vector.load %arg4[%c0_9, %c0_10] : memref<8x1xf32, #tpu.memory_space<vmem>>, vector<8x1xf32>
    tpu.vector_store %arg4[%c0_9, %c0_10], %19 {strides = array<i32>} : memref<8x1xf32, #tpu.memory_space<vmem>>, vector<8x1xf32>,
    return
  }
  func.func @transform_0(%arg0: i32) -> (i32, i32) {
    %c0_i32 = arith.constant 0 : i32
    %c0_i32_0 = arith.constant 0 : i32
    return %arg0, %c0_i32 : i32, i32
  }
  func.func @transform_1(%arg0: i32) -> (i32, i32) {
    %c0_i32 = arith.constant 0 : i32
    %c0_i32_0 = arith.constant 0 : i32
    return %arg0, %c0_i32 : i32, i32
  }
  func.func @transform_2(%arg0: i32) -> (i32, i32) {
    %c0_i32 = arith.constant 0 : i32
    %c0_i32_0 = arith.constant 0 : i32
    return %arg0, %c0_i32 : i32, i32
  }
  func.func @transform_3(%arg0: i32) -> (i32, i32) {
    %c0_i32 = arith.constant 0 : i32
    %c0_i32_0 = arith.constant 0 : i32
    return %arg0, %c0_i32 : i32, i32
  }
}

</mosaic_0001>

<llo_original>
// kernel: tpu_custom_call.1
$region0: #{tpu_custom_call.1}
  #allocation0 [shape = 'u32[]', space=smem, size = 0x4, offset = 0x4, fixed_abs, tag = 'smem constant byte address 0x4 - core index']
  #allocation1 [shape = 'u32[144,128]{1,0:T(1,128)}', space=vmem, size = 0x12000, scoped, tag = 'internal scratch']
  %s0 = inlined_call_operand.vmem [shape: f32[8,32], index: 0, kind: input, shape index: {}]
  %s1 = inlined_call_operand.hbm [shape: f32[8,32], index: 1, kind: input, shape index: {}]
  %s2 = inlined_call_operand.vmem [shape: f32[8,1], index: 2, kind: input, shape index: {}]
  %s3 = inlined_call_operand.vmem [shape: f32[8,1], index: 3, kind: output, shape index: {}]
  %s4 = sld [smem:[#allocation0]]
  $region26: #{tpu_custom_call.1} parent=0
    _
  %s6 = ssub.s32 1, %s4
  %s7 = scalar_select 0, %s6, %s4
  $region1: #{tpu_custom_call.1} parent=0
    #allocation2 [shape = 'u8[4096]{0}', space=vmem, size = 0x1000, scoped, tag = 'input window, operand 1, single buffered']
    #allocation3 [shape = 's32[1]{0}', space=sflag, size = 0x4, scoped, tag = 'scoped memory for tpu_custom_call.1']
    %8 = vsyncpa [#allocation3], 0
    // Predicated region
    $region2: #{tpu_custom_call.1} parent=1 // pred_check
      _
    $region3: #{tpu_custom_call.1} parent=1 // pred_check_branch
      %10 = sbr.rel (0) target = $region5
    $region4: #{tpu_custom_call.1} parent=1 // pred_region
      _
    $region5: #{tpu_custom_call.1} parent=1 // pred_fallthru
      _
    // Predicated region
    $region6: #{tpu_custom_call.1} parent=1 // pred_check
      _
    $region7: #{tpu_custom_call.1} parent=1 // pred_check_branch
      %12 = sbr.rel (0) target = $region9
    $region8: #{tpu_custom_call.1} parent=1 // pred_region
      %s14 = ssub.s32 128, 128
      %15 = vsyncadd [#allocation3], %s14
      %s17 = sshll.u32 [#allocation2], 4
      %s18 = int_to_ptr.vmem [resolvable:$true] %s17
      %20 = dma.hbm_to_vmem [thread:$0]  %s1, 128, %s18, [#allocation3]
    $region9: #{tpu_custom_call.1} parent=1 // pred_fallthru
      _
    // Predicated region
    $region10: #{tpu_custom_call.1} parent=1 // pred_check
      _
    $region11: #{tpu_custom_call.1} parent=1 // pred_check_branch
      %22 = sbr.rel (0) target = $region13
    $region12: #{tpu_custom_call.1} parent=1 // pred_region
      _
    $region13: #{tpu_custom_call.1} parent=1 // pred_fallthru
      _
    // Predicated region
    $region14: #{tpu_custom_call.1} parent=1 // pred_check
      _
    $region15: #{tpu_custom_call.1} parent=1 // pred_check_branch
      %24 = sbr.rel (0) target = $region17
    $region16: #{tpu_custom_call.1} parent=1 // pred_region
      %25 = dma.done [#allocation3], 128
    $region17: #{tpu_custom_call.1} parent=1 // pred_fallthru
      _
    %v26 = vld [vmem:[%s0] sm:$0xff]
    %v27 = vld [vmem:[#allocation2] sm:$0xff]
    %v28 = vsub.f32 %v26, %v27
    %v29 = vadd.f32 %v28, 1e-06
    %v30 = vmul.f32 %v29, %v29
    %vm31 = vcmask 261120
    %v32 = vsel %vm31, %v30, 0.0
    %33 = vadd.xlane.f32.xlu0 %v32
    %v34 = vpop.xlane.xlu0 %33
    %v35 = vrsqrt.pop %v34
    %v36 = vmul.f32 %v34, %v35
    %vm37 = vcmp.eq.f32.partialorder %v34, inf
    %v38 = vsel %vm37, %v34, %v36
    %vm39 = vcmp.eq.f32.partialorder %v34, 0.0
    %v40 = vand.u32 %v34, 2147483648
    %v41 = vsel %vm39, %v40, %v38
    %v42 = vsub.f32 0.002, %v41
    %v43 = vmax.f32 %v42, 0.0
    %v44 = vld [vmem:[%s2] sm:$0xff]
    %v45 = vmul.f32 %v43, %v43
    %v46 = vmul.f32 %v44, %v45
    %v47 = vsub.f32 1.0, %v44
    %v48 = vmul.f32 %v47, %v34
    %v49 = vadd.f32 %v46, %v48
    %vm50 = vcmask 7168
    %51 = vst.msk [vmem:[%s3] sm:$0xff] %vm50, %v49
    // Predicated region
    $region18: #{tpu_custom_call.1} parent=1 // pred_check
      _
    $region19: #{tpu_custom_call.1} parent=1 // pred_check_branch
      %53 = sbr.rel (0) target = $region21
    $region20: #{tpu_custom_call.1} parent=1 // pred_region
      _
    $region21: #{tpu_custom_call.1} parent=1 // pred_fallthru
      _
    // Predicated region
    $region22: #{tpu_custom_call.1} parent=1 // pred_check
      _
    $region23: #{tpu_custom_call.1} parent=1 // pred_check_branch
      %55 = sbr.rel (0) target = $region25
    $region24: #{tpu_custom_call.1} parent=1 // pred_region
      _
    $region25: #{tpu_custom_call.1} parent=1 // pred_fallthru
      _
    %56 = vsyncpa [#allocation3], 1

</llo_original>
